<compile_context>
chip_gen: v7x
topology: tpu7x:2x2x1
jax: 0.10.0
libtpu: 0.0.40
codegen_flags: <defaults>
</compile_context>

<pallas_src>
import functools

import jax
import jax.numpy as jnp
from jax.experimental import pallas as pl
from jax.experimental.pallas import tpu as pltpu

_LANES = 128
_WIDE_ACC_ROWS = 64  # wide accumulator = 8 independent vreg accumulation chains


def _cdiv(a, b):
    return -(-a // b)


def _round_up(a, b):
    return _cdiv(a, b) * b


def _tpu_kind():
    try:
        return jax.devices()[0].device_kind.lower()
    except Exception:
        return ""


def _num_tensorcores():
    # Only v7x has 2 TensorCores per chip; v5e/v6e (and unknown chips) get a
    # single-axis streaming grid with no fake "core" axis / duplicate DMAs.
    return 2 if "v7" in _tpu_kind() else 1


def _max_block_bytes():
    # ~4 MiB per input block on v6e/v7x (2 inputs x 2 pipeline buffers = 16 MiB,
    # well inside the 32 MiB default scoped-VMEM); 2 MiB on v5e / unknown chips
    # (v5e's default scoped-VMEM is only 16 MiB).
    kind = _tpu_kind()
    if ("v6" in kind) or ("v7" in kind):
        return 4 << 20
    return 2 << 20


def _rmse_partial_kernel(x_ref, y_ref, out_ref, *, block_rows, acc_rows,
                         n_inner, valid_rows, two_axes):
    """Accumulate sum((x-y)^2) of this core's blocks into a resident f32 block."""
    if two_axes:
        c = pl.program_id(0)          # core-split axis (v7x CORE_PARALLEL)
        i = pl.program_id(1)          # sequential reduction axis
        blk = c * n_inner + i
    else:
        i = pl.program_id(0)
        blk = i

    @pl.when(i == 0)
    def _init():
        out_ref[...] = jnp.zeros_like(out_ref)

    n_chunks = block_rows // acc_rows
    row0 = blk * block_rows
    # Only the tail block (and, in the 2-core case, fully clamped duplicate
    # blocks) pay for the row mask; interior blocks take the unmasked fast path.
    needs_mask = row0 + block_rows > valid_rows

    @pl.when(jnp.logical_not(needs_mask))
    def _fast():
        d = x_ref[...].astype(jnp.float32) - y_ref[...].astype(jnp.float32)
        out_ref[...] += (d * d).reshape(n_chunks, acc_rows, _LANES).sum(axis=0)

    @pl.when(needs_mask)
    def _masked():
        local_row = jax.lax.broadcasted_iota(jnp.int32, (block_rows, 1), 0)
        valid = (row0 + local_row) < valid_rows
        d = x_ref[...].astype(jnp.float32) - y_ref[...].astype(jnp.float32)
        # Select AFTER d*d so NaN/Inf garbage in out-of-bounds rows cannot leak.
        dd = jnp.where(valid, d * d, jnp.float32(0.0))
        out_ref[...] += dd.reshape(n_chunks, acc_rows, _LANES).sum(axis=0)


def _partial_sums(x2d, y2d, rows, num_cores):
    """Stream (rows, 128) slabs through the kernel; return per-core partial sums."""
    x_item = jnp.dtype(x2d.dtype).itemsize
    y_item = jnp.dtype(y2d.dtype).itemsize
    itemsize = min(x_item, y_item)

    # Sublane alignment for the narrowest input dtype (f32->8, bf16->16, int8->32).
    row_align = 8 * max(1, 4 // itemsize)
    # Byte-based block cap so each input block stays ~2-4 MiB regardless of dtype.
    cap_rows = _round_up(max(row_align, _max_block_bytes() // (itemsize * _LANES)),
                         row_align)

    block_rows = min(cap_rows, _round_up(max(1, _cdiv(rows, num_cores)), row_align))
    # Never make the block taller than the (sublane-aligned) array itself.
    block_rows = min(block_rows, _round_up(rows, row_align))

    # Wide accumulator whenever the block height allows it; (8,128) otherwise.
    acc_rows = _WIDE_ACC_ROWS if block_rows % _WIDE_ACC_ROWS == 0 else 8

    n_blocks = _cdiv(rows, block_rows)
    n_inner = _cdiv(n_blocks, num_cores)
    last_block = n_blocks - 1

    kernel = functools.partial(
        _rmse_partial_kernel,
        block_rows=block_rows,
        acc_rows=acc_rows,
        n_inner=n_inner,
        valid_rows=rows,
        two_axes=(num_cores > 1),
    )

    if num_cores > 1:
        grid = (num_cores, n_inner)

        def in_map(c, i):
            # Clamp so the generated DMA never reads past the array; clamped
            # duplicate steps are fully masked inside the kernel.
            return (jnp.minimum(c * n_inner + i, last_block), 0)

        in_spec = pl.BlockSpec((block_rows, _LANES), in_map)
        out_spec = pl.BlockSpec((acc_rows, _LANES), lambda c, i: (c, 0))
        semantics = (pltpu.CORE_PARALLEL, pltpu.ARBITRARY)
    else:
        grid = (n_blocks,)
        in_spec = pl.BlockSpec((block_rows, _LANES), lambda i: (i, 0))
        out_spec = pl.BlockSpec((acc_rows, _LANES), lambda i: (0, 0))
        semantics = (pltpu.ARBITRARY,)

    n_elems = rows * _LANES
    cost = pl.CostEstimate(
        flops=3 * n_elems,
        transcendentals=0,
        bytes_accessed=n_elems * (x_item + y_item)
        + num_cores * acc_rows * _LANES * 4,
    )

    return pl.pallas_call(
        kernel,
        out_shape=jax.ShapeDtypeStruct((num_cores * acc_rows, _LANES), jnp.float32),
        grid_spec=pltpu.PrefetchScalarGridSpec(
            num_scalar_prefetch=0,
            grid=grid,
            in_specs=[in_spec, in_spec],
            out_specs=out_spec,
        ),
        compiler_params=pltpu.CompilerParams(dimension_semantics=semantics),
        cost_estimate=cost,
    )(x2d, y2d)


def _sum_squared_diff(x2d, y2d, rows):
    num_cores = _num_tensorcores()
    if num_cores > 1:
        try:
            partials = _partial_sums(x2d, y2d, rows, num_cores)
            jax.block_until_ready(partials)  # surface lowering/runtime errors here
            return jnp.sum(partials)
        except Exception:
            pass  # fall back to single-core streaming below
    partials = _partial_sums(x2d, y2d, rows, 1)
    return jnp.sum(partials)


def rmse_loss(x, y):
    """sqrt(mean((x - y)**2)), matching torch.sqrt(nn.MSELoss()(x, y))."""
    assert x.shape == y.shape, "x and y must have the same shape"
    n_total = x.size
    assert n_total > 0

    xf = jnp.ravel(x)
    yf = jnp.ravel(y)

    # Lane-aligned prefix streams through the kernel (zero-copy reshape when the
    # size is already a multiple of 128); the <128-element tail is handled in
    # plain jnp instead of materializing padded copies of both inputs.
    n_main = (n_total // _LANES) * _LANES

    total = jnp.float32(0.0)
    if n_main < n_total:
        dt = xf[n_main:].astype(jnp.float32) - yf[n_main:].astype(jnp.float32)
        total = total + jnp.sum(dt * dt)

    if n_main > 0:
        rows = n_main // _LANES
        if n_main == n_total:
            x2d = xf.reshape(rows, _LANES)
            y2d = yf.reshape(rows, _LANES)
        else:
            x2d = xf[:n_main].reshape(rows, _LANES)
            y2d = yf[:n_main].reshape(rows, _LANES)
        total = total + _sum_squared_diff(x2d, y2d, rows)

    return jnp.sqrt(total / jnp.float32(n_total))


if __name__ == "__main__":
    key = jax.random.PRNGKey(0)
    kx, ky = jax.random.split(key)
    # Small NCHW-like inputs (batch=2, channels=4, spatial=16x16).
    x = jax.random.normal(kx, (2, 4, 16, 16), dtype=jnp.float32)
    y = jax.random.normal(ky, (2, 4, 16, 16), dtype=jnp.float32)

    loss = rmse_loss(x, y)
    loss = jax.block_until_ready(loss)

    # Sanity check against the plain-JAX reference.
    ref = jnp.sqrt(jnp.mean((x - y) ** 2))
    assert jnp.allclose(loss, ref, rtol=1e-5, atol=1e-6), (loss, ref)
    print("KERNEL_OK")
</pallas_src>

<mosaic_0001>
module attributes {stable_mosaic.version = 11 : i64} {
  func.func @_rmse_partial_kernel(%arg0: i32, %arg1: memref<16x128xf32, #tpu.memory_space<vmem>>, %arg2: memref<16x128xf32, #tpu.memory_space<vmem>>, %arg3: memref<8x128xf32, #tpu.memory_space<vmem>>) attributes {dimension_semantics = [#tpu.dimension_semantics<arbitrary>], iteration_bounds = array<i64: 1>, scalar_prefetch = 0 : i64, scratch_operands = 0 : i64, tpu.core_type = #tpu.core_type<tc>, window_params = [{transform_indices = @transform_0, window_bounds = array<i64: 16, 128>}, {transform_indices = @transform_1, window_bounds = array<i64: 16, 128>}, {pipeline_mode = #tpu.pipeline_mode<synchronous>, transform_indices = @transform_2, window_bounds = array<i64: 8, 128>}]} {
    %c0_i32 = arith.constant 0 : i32
    %0 = arith.cmpi eq, %arg0, %c0_i32 : i32
    %1 = arith.extui %0 : i1 to i32
    %c0_i32_0 = arith.constant 0 : i32
    %2 = arith.cmpi ne, %1, %c0_i32_0 : i32
    scf.if %2 {
      %cst = arith.constant 0.000000e+00 : f32
      %11 = vector.broadcast %cst : f32 to vector<8x128xf32>
      %c0 = arith.constant 0 : index
      %c0_5 = arith.constant 0 : index
      %12 = vector.load %arg3[%c0, %c0_5] : memref<8x128xf32, #tpu.memory_space<vmem>>, vector<8x128xf32>
      tpu.vector_store %arg3[%c0, %c0_5], %11 {strides = array<i32>} : memref<8x128xf32, #tpu.memory_space<vmem>>, vector<8x128xf32>,
    } else {
    }
    %c16_i32 = arith.constant 16 : i32
    %3 = arith.muli %arg0, %c16_i32 : i32
    %c16_i32_1 = arith.constant 16 : i32
    %4 = arith.addi %3, %c16_i32_1 : i32
    %c16_i32_2 = arith.constant 16 : i32
    %5 = arith.cmpi sgt, %4, %c16_i32_2 : i32
    %true = arith.constant true
    %6 = arith.xori %5, %true : i1
    %7 = arith.extui %6 : i1 to i32
    %c0_i32_3 = arith.constant 0 : i32
    %8 = arith.cmpi ne, %7, %c0_i32_3 : i32
    scf.if %8 {
      %c0 = arith.constant 0 : index
      %c0_5 = arith.constant 0 : index
      %11 = vector.load %arg1[%c0, %c0_5] : memref<16x128xf32, #tpu.memory_space<vmem>>, vector<16x128xf32>
      %c0_6 = arith.constant 0 : index
      %c0_7 = arith.constant 0 : index
      %12 = vector.load %arg2[%c0_6, %c0_7] : memref<16x128xf32, #tpu.memory_space<vmem>>, vector<16x128xf32>
      %13 = arith.subf %11, %12 : vector<16x128xf32>
      %c0_8 = arith.constant 0 : index
      %c0_9 = arith.constant 0 : index
      %14 = vector.load %arg3[%c0_8, %c0_9] : memref<8x128xf32, #tpu.memory_space<vmem>>, vector<8x128xf32>
      %15 = arith.mulf %13, %13 : vector<16x128xf32>
      %16 = vector.shape_cast %15 : vector<16x128xf32> to vector<2x8x128xf32>
      %cst = arith.constant dense<0.000000e+00> : vector<8x128xf32>
      %17 = vector.multi_reduction <add>, %16, %cst [0] : vector<2x8x128xf32> to vector<8x128xf32>
      %18 = arith.addf %14, %17 : vector<8x128xf32>
      %c0_10 = arith.constant 0 : index
      %c0_11 = arith.constant 0 : index
      %19 = vector.load %arg3[%c0_10, %c0_11] : memref<8x128xf32, #tpu.memory_space<vmem>>, vector<8x128xf32>
      tpu.vector_store %arg3[%c0_10, %c0_11], %18 {strides = array<i32>} : memref<8x128xf32, #tpu.memory_space<vmem>>, vector<8x128xf32>,
    } else {
    }
    %9 = arith.extui %5 : i1 to i32
    %c0_i32_4 = arith.constant 0 : i32
    %10 = arith.cmpi ne, %9, %c0_i32_4 : i32
    scf.if %10 {
      %11 = tpu.iota {dimensions = array<i32: 0>} : vector<16x1xi32>
      %12 = vector.broadcast %3 : i32 to vector<16x1xi32>
      %13 = arith.addi %12, %11 : vector<16x1xi32>
      %c16_i32_5 = arith.constant 16 : i32
      %14 = vector.broadcast %c16_i32_5 : i32 to vector<16x1xi32>
      %15 = arith.cmpi slt, %13, %14 : vector<16x1xi32>
      %c0 = arith.constant 0 : index
      %c0_6 = arith.constant 0 : index
      %16 = vector.load %arg1[%c0, %c0_6] : memref<16x128xf32, #tpu.memory_space<vmem>>, vector<16x128xf32>
      %c0_7 = arith.constant 0 : index
      %c0_8 = arith.constant 0 : index
      %17 = vector.load %arg2[%c0_7, %c0_8] : memref<16x128xf32, #tpu.memory_space<vmem>>, vector<16x128xf32>
      %18 = arith.subf %16, %17 : vector<16x128xf32>
      %19 = arith.mulf %18, %18 : vector<16x128xf32>
      %cst = arith.constant 0.000000e+00 : f32
      %20 = vector.shape_cast %15 : vector<16x1xi1> to vector<16x1xi1>
      %21 = vector.broadcast %20 : vector<16x1xi1> to vector<16x128xi1>
      %22 = vector.broadcast %cst : f32 to vector<16x128xf32>
      %23 = arith.select %21, %19, %22 : vector<16x128xi1>, vector<16x128xf32>
      %c0_9 = arith.constant 0 : index
      %c0_10 = arith.constant 0 : index
      %24 = vector.load %arg3[%c0_9, %c0_10] : memref<8x128xf32, #tpu.memory_space<vmem>>, vector<8x128xf32>
      %25 = vector.shape_cast %23 : vector<16x128xf32> to vector<2x8x128xf32>
      %cst_11 = arith.constant dense<0.000000e+00> : vector<8x128xf32>
      %26 = vector.multi_reduction <add>, %25, %cst_11 [0] : vector<2x8x128xf32> to vector<8x128xf32>
      %27 = arith.addf %24, %26 : vector<8x128xf32>
      %c0_12 = arith.constant 0 : index
      %c0_13 = arith.constant 0 : index
      %28 = vector.load %arg3[%c0_12, %c0_13] : memref<8x128xf32, #tpu.memory_space<vmem>>, vector<8x128xf32>
      tpu.vector_store %arg3[%c0_12, %c0_13], %27 {strides = array<i32>} : memref<8x128xf32, #tpu.memory_space<vmem>>, vector<8x128xf32>,
    } else {
    }
    return
  }
  func.func @transform_0(%arg0: i32) -> (i32, i32) {
    %c0_i32 = arith.constant 0 : i32
    %c0_i32_0 = arith.constant 0 : i32
    return %arg0, %c0_i32 : i32, i32
  }
  func.func @transform_1(%arg0: i32) -> (i32, i32) {
    %c0_i32 = arith.constant 0 : i32
    %c0_i32_0 = arith.constant 0 : i32
    return %arg0, %c0_i32 : i32, i32
  }
  func.func @transform_2(%arg0: i32) -> (i32, i32) {
    %c0_i32 = arith.constant 0 : i32
    %c0_i32_0 = arith.constant 0 : i32
    %c0_i32_1 = arith.constant 0 : i32
    return %c0_i32, %c0_i32_0 : i32, i32
  }
}

</mosaic_0001>

<llo_original>
// kernel: tpu_custom_call.1
$region0: #{tpu_custom_call.1}
  #allocation0 [shape = 'u32[]', space=smem, size = 0x4, offset = 0x4, fixed_abs, tag = 'smem constant byte address 0x4 - core index']
  #allocation1 [shape = 'u32[144,128]{1,0:T(1,128)}', space=vmem, size = 0x12000, scoped, tag = 'internal scratch']
  %s0 = inlined_call_operand.hbm [shape: f32[16,128], index: 0, kind: input, shape index: {}]
  %s1 = inlined_call_operand.hbm [shape: f32[16,128], index: 1, kind: input, shape index: {}]
  %s2 = inlined_call_operand.hbm [shape: f32[8,128], index: 2, kind: output, shape index: {}]
  %s3 = sld [smem:[#allocation0]]
  $region38: #{tpu_custom_call.1} parent=0
    _
  %s5 = ssub.s32 1, %s3
  %s6 = scalar_select 0, %s5, %s3
  $region1: #{tpu_custom_call.1} parent=0
    #allocation2 [shape = 'u8[8192]{0}', space=vmem, size = 0x2000, scoped, tag = 'input window, operand 0, single buffered']
    #allocation3 [shape = 's32[1]{0}', space=sflag, size = 0x4, scoped, tag = 'scoped memory for tpu_custom_call.1']
    #allocation4 [shape = 's32[1]{0}', space=sflag, size = 0x4, scoped, tag = 'scoped memory for tpu_custom_call.1']
    #allocation5 [shape = 'u8[8192]{0}', space=vmem, size = 0x2000, scoped, tag = 'input window, operand 1, single buffered']
    #allocation6 [shape = 's32[1]{0}', space=sflag, size = 0x4, scoped, tag = 'scoped memory for tpu_custom_call.1']
    #allocation7 [shape = 'u8[4096]{0}', space=vmem, size = 0x1000, scoped, tag = 'output window, operand 0, single buffered']
    %7 = vsyncpa [#allocation3], 0
    %8 = vsyncpa [#allocation6], 0
    %9 = vsyncpa [#allocation4], 0
    // Predicated region
    $region2: #{tpu_custom_call.1} parent=1 // pred_check
      _
    $region3: #{tpu_custom_call.1} parent=1 // pred_check_branch
      %11 = sbr.rel (0) target = $region5
    $region4: #{tpu_custom_call.1} parent=1 // pred_region
      %s13 = ssub.s32 256, 256
      %14 = vsyncadd [#allocation3], %s13
      %s15 = sshll.u32 [#allocation2], 4
      %s16 = int_to_ptr.vmem [resolvable:$true] %s15
      %21 = dma.hbm_to_vmem [thread:$0]  %s0, 256, %s16, [#allocation3], 128, 128, 8
    $region5: #{tpu_custom_call.1} parent=1 // pred_fallthru
      _
    // Predicated region
    $region6: #{tpu_custom_call.1} parent=1 // pred_check
      _
    $region7: #{tpu_custom_call.1} parent=1 // pred_check_branch
      %23 = sbr.rel (0) target = $region9
    $region8: #{tpu_custom_call.1} parent=1 // pred_region
      %s25 = ssub.s32 256, 256
      %26 = vsyncadd [#allocation6], %s25
      %s27 = sshll.u32 [#allocation5], 4
      %s28 = int_to_ptr.vmem [resolvable:$true] %s27
      %33 = dma.hbm_to_vmem [thread:$0]  %s1, 256, %s28, [#allocation6], 128, 128, 8
    $region9: #{tpu_custom_call.1} parent=1 // pred_fallthru
      _
    // Predicated region
    $region10: #{tpu_custom_call.1} parent=1 // pred_check
      _
    $region11: #{tpu_custom_call.1} parent=1 // pred_check_branch
      %35 = sbr.rel (0) target = $region13
    $region12: #{tpu_custom_call.1} parent=1 // pred_region
      %36 = dma.done [#allocation3], 256
    $region13: #{tpu_custom_call.1} parent=1 // pred_fallthru
      _
    // Predicated region
    $region14: #{tpu_custom_call.1} parent=1 // pred_check
      _
    $region15: #{tpu_custom_call.1} parent=1 // pred_check_branch
      %38 = sbr.rel (0) target = $region17
    $region16: #{tpu_custom_call.1} parent=1 // pred_region
      %39 = dma.done [#allocation6], 256
    $region17: #{tpu_custom_call.1} parent=1 // pred_fallthru
      _
    %p40 = scmp.eq.s32.totalorder 0, 0
    // Predicated region
    $region18: #{tpu_custom_call.1} parent=1 // pred_check
      %p41 = pneg %p40
    $region19: #{tpu_custom_call.1} parent=1 // pred_check_branch
      %43 = sbr.rel (%p41) target = $region21
    $region20: #{tpu_custom_call.1} parent=1 // pred_region
      %44 = vst [vmem:[#allocation7] sm:$0xff] 0.0
    $region21: #{tpu_custom_call.1} parent=1 // pred_fallthru
      _
    %s45 = smul.u32 0, 16
    %s46 = sadd.s32 %s45, 16
    %p47 = scmp.gt.s32.totalorder %s46, 16
    %p48 = scmp.le.s32.totalorder %s46, 16
    // Predicated region
    $region22: #{tpu_custom_call.1} parent=1 // pred_check
      %p49 = pneg %p48
    $region23: #{tpu_custom_call.1} parent=1 // pred_check_branch
      %51 = sbr.rel (%p49) target = $region25
    $region24: #{tpu_custom_call.1} parent=1 // pred_region
      %v52 = vld [vmem:[#allocation2] sm:$0xff]
      %v53 = vld [vmem:[#allocation2 + $0x8] sm:$0xff]
      %v54 = vld [vmem:[#allocation5] sm:$0xff]
      %v55 = vld [vmem:[#allocation5 + $0x8] sm:$0xff]
      %v56 = vsub.f32 %v52, %v54
      %v57 = vsub.f32 %v53, %v55
      %v58 = vld [vmem:[#allocation7] sm:$0xff]
      %v59 = vmul.f32 %v56, %v56
      %v60 = vmul.f32 %v57, %v57
      %v61 = vadd.f32 %v59, %v60
      %v62 = vadd.f32 %v58, %v61
      %63 = vst [vmem:[#allocation7] sm:$0xff] %v62
    $region25: #{tpu_custom_call.1} parent=1 // pred_fallthru
      _
    // Predicated region
    $region26: #{tpu_custom_call.1} parent=1 // pred_check
      %p64 = pneg %p47
    $region27: #{tpu_custom_call.1} parent=1 // pred_check_branch
      %66 = sbr.rel (%p64) target = $region29
    $region28: #{tpu_custom_call.1} parent=1 // pred_region
      %v67 = vlaneseq
      %v68 = vshrl.u32 %v67, 7
      %v69 = vadd.s32 %v68, 8
      %v70 = vstv %s45
      %v71 = vadd.s32 %v70, %v68
      %v72 = vadd.s32 %v70, %v69
      %vm73 = vcmp.lt.s32.totalorder %v71, 16
      %vm74 = vcmp.lt.s32.totalorder %v72, 16
      %v75 = vld [vmem:[#allocation2] sm:$0xff]
      %v76 = vld [vmem:[#allocation2 + $0x8] sm:$0xff]
      %v77 = vld [vmem:[#allocation5] sm:$0xff]
      %v78 = vld [vmem:[#allocation5 + $0x8] sm:$0xff]
      %v79 = vsub.f32 %v75, %v77
      %v80 = vsub.f32 %v76, %v78
      %v81 = vmul.f32 %v79, %v79
      %v82 = vmul.f32 %v80, %v80
      %v83 = vsel %vm73, 1, 0
      %v84 = vsel %vm74, 1, 0
      %vm85 = vcmp.eq.s32.totalorder %v83, 1
      %vm86 = vcmp.eq.s32.totalorder %v84, 1
      %v87 = vsel %vm85, %v81, 0.0
      %v88 = vsel %vm86, %v82, 0.0
      %v89 = vld [vmem:[#allocation7] sm:$0xff]
      %v90 = vadd.f32 %v87, %v88
      %v91 = vadd.f32 %v89, %v90
      %92 = vst [vmem:[#allocation7] sm:$0xff] %v91
    $region29: #{tpu_custom_call.1} parent=1 // pred_fallthru
      _
    // Predicated region
    $region30: #{tpu_custom_call.1} parent=1 // pred_check
      _
    $region31: #{tpu_custom_call.1} parent=1 // pred_check_branch
      %94 = sbr.rel (0) target = $region33
    $region32: #{tpu_custom_call.1} parent=1 // pred_region
      %s96 = ssub.s32 128, 128
      %97 = vsyncadd [#allocation4], %s96
      %s99 = sshll.u32 [#allocation7], 4
      %s100 = int_to_ptr.vmem [resolvable:$true] %s99
      %102 = dma.vmem_to_hbm [thread:$0]  %s100, 128, %s2, [#allocation4]
    $region33: #{tpu_custom_call.1} parent=1 // pred_fallthru
      _
    // Predicated region
    $region34: #{tpu_custom_call.1} parent=1 // pred_check
      _
    $region35: #{tpu_custom_call.1} parent=1 // pred_check_branch
      %104 = sbr.rel (0) target = $region37
    $region36: #{tpu_custom_call.1} parent=1 // pred_region
      %105 = dma.done [#allocation4], 128
    $region37: #{tpu_custom_call.1} parent=1 // pred_fallthru
      _
    %106 = vsyncpa [#allocation3], 1
    %107 = vsyncpa [#allocation6], 1
    %108 = vsyncpa [#allocation4], 1

</llo_original>
